<compile_context>
chip_gen: v6e
topology: v6e:2x2x1
jax: 0.10.0
libtpu: 0.0.40
codegen_flags: <defaults>
</compile_context>

<pallas_src>
import functools

import jax
import jax.numpy as jnp
from jax.experimental import pallas as pl
from jax.experimental.pallas import tpu as pltpu

HIDDEN = 32
DROPOUT_P = 0.1
LN_EPS = 1e-6


def _round_up(a, b):
    return (a + b - 1) // b * b


def _keep_mask(shape, row_offset, row_width, seed_u32, dropout_p):
    """Deterministic Bernoulli(1-p) keep mask from a stateless hash.

    Hashes the *global flat element index* mixed with the seed, so every grid tile
    draws an independent mask, the result is independent of the tiling, and no
    pltpu.prng_* primitive is needed (works compiled and in interpret mode).
    """
    r = jax.lax.broadcasted_iota(jnp.int32, shape, 0) + row_offset
    c = jax.lax.broadcasted_iota(jnp.int32, shape, 1)
    idx = (r * row_width + c).astype(jnp.uint32)
    h = idx * jnp.uint32(0x9E3779B1) + seed_u32
    h = h ^ (h >> jnp.uint32(16))
    h = h * jnp.uint32(0x7FEB352D)
    h = h ^ (h >> jnp.uint32(15))
    h = h * jnp.uint32(0x846CA68B)
    h = h ^ (h >> jnp.uint32(16))
    r24 = (h >> jnp.uint32(8)).astype(jnp.int32)            # uniform in [0, 2^24)
    thresh = jnp.int32(int(round(dropout_p * (1 << 24))))   # integer-domain keep test
    return r24 >= thresh


def _packed_kernel(seed_ref,                                  # scalar prefetch (SMEM)
                   x_ref, gamma_ref, beta_ref, w_ref, b_ref, mseg_ref,
                   o_ref,
                   *, eps, dropout_p, train, tile_rows, lane_width):
    """Lane-dense path: each 128-lane row holds (128//hidden) logical rows."""
    x = x_ref[...].astype(jnp.float32)                        # [tile_rows, 128]

    # Segmented LayerNorm: mseg is block-diag(ones(d,d)/d), so x @ mseg gives the
    # per-segment mean already broadcast across its 'd' lanes (MXU is idle anyway).
    mseg = mseg_ref[...]
    mean = jnp.dot(x, mseg, preferred_element_type=jnp.float32)
    cen = x - mean
    var = jnp.dot(cen * cen, mseg, preferred_element_type=jnp.float32)
    y = cen * jax.lax.rsqrt(var + eps) * gamma_ref[...] + beta_ref[...]

    # sublayer = Linear(d, d), applied per segment via block-diagonal [128,128] W.
    h = jnp.dot(y, w_ref[...], preferred_element_type=jnp.float32) + b_ref[...]

    if train and dropout_p > 0.0:
        row0 = pl.program_id(0) * tile_rows
        keep = _keep_mask((tile_rows, lane_width), row0, lane_width,
                          seed_ref[0].astype(jnp.uint32), dropout_p)
        h = jnp.where(keep, h * (1.0 / (1.0 - dropout_p)), 0.0)

    o_ref[...] = (x + h).astype(o_ref.dtype)                  # full-lane store


def _plain_kernel(seed_ref,
                  x_ref, gamma_ref, beta_ref, w_ref, b_ref,
                  o_ref,
                  *, eps, dropout_p, train, tile_rows, hidden):
    """Fallback path for hidden sizes that don't pack into 128 lanes."""
    x = x_ref[...].astype(jnp.float32)                        # [tile_rows, hidden]
    mean = jnp.mean(x, axis=-1, keepdims=True)
    cen = x - mean
    var = jnp.mean(cen * cen, axis=-1, keepdims=True)
    y = cen * jax.lax.rsqrt(var + eps) * gamma_ref[...] + beta_ref[...]
    h = jnp.dot(y, w_ref[...], preferred_element_type=jnp.float32) + b_ref[...]

    if train and dropout_p > 0.0:
        row0 = pl.program_id(0) * tile_rows
        keep = _keep_mask((tile_rows, hidden), row0, hidden,
                          seed_ref[0].astype(jnp.uint32), dropout_p)
        h = jnp.where(keep, h * (1.0 / (1.0 - dropout_p)), 0.0)

    o_ref[...] = (x + h).astype(o_ref.dtype)


def sublayer_connection(x, gamma, beta, w, b, seed, *, dropout_p=DROPOUT_P,
                        eps=LN_EPS, train=True):
    """x: [batch, seq, hidden] -> same shape.  sublayer = Linear(hidden, hidden)."""
    batch, seq, d = x.shape
    m = batch * seq
    out_dtype = x.dtype
    f32 = jnp.float32

    # Hoisted parameter casts (done once, VMEM-resident across grid steps).
    gamma = gamma.astype(f32)
    beta = beta.astype(f32)
    w = w.astype(f32)
    b = b.astype(f32)
    seed_arr = jnp.asarray([seed], dtype=jnp.int32)

    compiler_params = pltpu.CompilerParams(dimension_semantics=("parallel",))

    if 128 % d == 0:
        # ---- lane-dense packed path (used for hidden=32) ----
        p = 128 // d
        lane_w = p * d                                        # = 128
        rows = -(-m // p)                                     # packed rows of data
        tile_rows = min(256, _round_up(rows, 8))              # ~1024 logical rows/tile
        rows_pad = _round_up(rows, tile_rows)
        m_pad = rows_pad * p

        x2d = jnp.pad(x.reshape(m, d), ((0, m_pad - m), (0, 0)))
        xp = x2d.reshape(rows_pad, lane_w)                    # row-major repack

        eye_p = jnp.eye(p, dtype=f32)
        w_in = jnp.kron(eye_p, w)                                          # [128,128]
        mseg = jnp.kron(eye_p, jnp.full((d, d), 1.0 / d, dtype=f32))       # [128,128]
        gamma_in = jnp.tile(gamma, p).reshape(1, lane_w)
        beta_in = jnp.tile(beta, p).reshape(1, lane_w)
        b_in = jnp.tile(b, p).reshape(1, lane_w)

        kernel = functools.partial(_packed_kernel, eps=eps, dropout_p=dropout_p,
                                   train=train, tile_rows=tile_rows,
                                   lane_width=lane_w)

        grid_spec = pltpu.PrefetchScalarGridSpec(
            num_scalar_prefetch=1,
            grid=(rows_pad // tile_rows,),
            in_specs=[
                pl.BlockSpec((tile_rows, lane_w), lambda i, s: (i, 0)),   # x (tiled)
                pl.BlockSpec((1, lane_w), lambda i, s: (0, 0)),           # gamma
                pl.BlockSpec((1, lane_w), lambda i, s: (0, 0)),           # beta
                pl.BlockSpec((lane_w, lane_w), lambda i, s: (0, 0)),      # W blockdiag
                pl.BlockSpec((1, lane_w), lambda i, s: (0, 0)),           # b
                pl.BlockSpec((lane_w, lane_w), lambda i, s: (0, 0)),      # seg-mean M
            ],
            out_specs=pl.BlockSpec((tile_rows, lane_w), lambda i, s: (i, 0)),
        )

        out = pl.pallas_call(
            kernel,
            out_shape=jax.ShapeDtypeStruct((rows_pad, lane_w), out_dtype),
            grid_spec=grid_spec,
            compiler_params=compiler_params,
        )(seed_arr, xp, gamma_in, beta_in, w_in, b_in, mseg)

        out2d = out.reshape(m_pad, d)[:m]
    else:
        # ---- general fallback path ----
        tile_rows = min(1024, _round_up(m, 8))
        m_pad = _round_up(m, tile_rows)
        x2d = jnp.pad(x.reshape(m, d), ((0, m_pad - m), (0, 0)))

        kernel = functools.partial(_plain_kernel, eps=eps, dropout_p=dropout_p,
                                   train=train, tile_rows=tile_rows, hidden=d)

        grid_spec = pltpu.PrefetchScalarGridSpec(
            num_scalar_prefetch=1,
            grid=(m_pad // tile_rows,),
            in_specs=[
                pl.BlockSpec((tile_rows, d), lambda i, s: (i, 0)),        # x (tiled)
                pl.BlockSpec((1, d), lambda i, s: (0, 0)),                # gamma
                pl.BlockSpec((1, d), lambda i, s: (0, 0)),                # beta
                pl.BlockSpec((d, d), lambda i, s: (0, 0)),                # W
                pl.BlockSpec((1, d), lambda i, s: (0, 0)),                # b
            ],
            out_specs=pl.BlockSpec((tile_rows, d), lambda i, s: (i, 0)),
        )

        out2d = pl.pallas_call(
            kernel,
            out_shape=jax.ShapeDtypeStruct((m_pad, d), out_dtype),
            grid_spec=grid_spec,
            compiler_params=compiler_params,
        )(seed_arr, x2d, gamma.reshape(1, d), beta.reshape(1, d),
          w, b.reshape(1, d))[:m]

    return out2d.reshape(batch, seq, d)


def reference(x, gamma, beta, w, b, *, eps=LN_EPS):
    # Eval-mode (no dropout) reference for the fused LN -> Linear -> residual path.
    xf = x.astype(jnp.float32)
    mean = jnp.mean(xf, axis=-1, keepdims=True)
    var = jnp.mean((xf - mean) ** 2, axis=-1, keepdims=True)
    y = (xf - mean) * jax.lax.rsqrt(var + eps) * gamma + beta
    h = jnp.einsum("bsd,de->bse", y, w) + b
    return xf + h


if __name__ == "__main__":
    key = jax.random.PRNGKey(0)
    kx, kw = jax.random.split(key)

    batch, seq, hidden = 2, 8, HIDDEN
    x = jax.random.normal(kx, (batch, seq, hidden), dtype=jnp.float32)

    # LayerNorm: gamma=1, beta=0; Linear: small random W, b=0.
    gamma = jnp.ones((hidden,), dtype=jnp.float32)
    beta = jnp.zeros((hidden,), dtype=jnp.float32)
    w = jax.random.normal(kw, (hidden, hidden), dtype=jnp.float32) * (1.0 / hidden ** 0.5)
    b = jnp.zeros((hidden,), dtype=jnp.float32)

    # Train mode (with in-kernel dropout) — the requested forward pass.
    out = sublayer_connection(x, gamma, beta, w, b, seed=1234,
                              dropout_p=DROPOUT_P, train=True)
    jax.block_until_ready(out)
    assert out.shape == x.shape

    # Correctness check of the fused LayerNorm+Linear+residual path (dropout off).
    out_eval = sublayer_connection(x, gamma, beta, w, b, seed=0,
                                   dropout_p=0.0, train=False)
    jax.block_until_ready(out_eval)
    ref = reference(x, gamma, beta, w, b)
    assert jnp.allclose(out_eval, ref, atol=5e-3, rtol=5e-3), "mismatch vs reference"

    print("KERNEL_OK")
</pallas_src>

<mosaic_0001>
module attributes {stable_mosaic.version = 11 : i64} {
  func.func @_packed_kernel(%arg0: i32, %arg1: memref<1xi32, #tpu.memory_space<smem>>, %arg2: memref<8x128xf32, #tpu.memory_space<vmem>>, %arg3: memref<1x128xf32, #tpu.memory_space<vmem>>, %arg4: memref<1x128xf32, #tpu.memory_space<vmem>>, %arg5: memref<128x128xf32, #tpu.memory_space<vmem>>, %arg6: memref<1x128xf32, #tpu.memory_space<vmem>>, %arg7: memref<128x128xf32, #tpu.memory_space<vmem>>, %arg8: memref<8x128xf32, #tpu.memory_space<vmem>>) attributes {dimension_semantics = [#tpu.dimension_semantics<parallel>], iteration_bounds = array<i64: 1>, scalar_prefetch = 1 : i64, scratch_operands = 0 : i64, tpu.core_type = #tpu.core_type<tc>, window_params = [{transform_indices = @transform_0, window_bounds = array<i64: 8, 128>}, {pipeline_mode = #tpu.pipeline_mode<synchronous>, transform_indices = @transform_1, window_bounds = array<i64: 1, 128>}, {pipeline_mode = #tpu.pipeline_mode<synchronous>, transform_indices = @transform_2, window_bounds = array<i64: 1, 128>}, {pipeline_mode = #tpu.pipeline_mode<synchronous>, transform_indices = @transform_3, window_bounds = array<i64: 128, 128>}, {pipeline_mode = #tpu.pipeline_mode<synchronous>, transform_indices = @transform_4, window_bounds = array<i64: 1, 128>}, {pipeline_mode = #tpu.pipeline_mode<synchronous>, transform_indices = @transform_5, window_bounds = array<i64: 128, 128>}, {transform_indices = @transform_6, window_bounds = array<i64: 8, 128>}]} {
    %c0 = arith.constant 0 : index
    %c0_0 = arith.constant 0 : index
    %0 = vector.load %arg2[%c0, %c0_0] : memref<8x128xf32, #tpu.memory_space<vmem>>, vector<8x128xf32>
    %c0_1 = arith.constant 0 : index
    %c0_2 = arith.constant 0 : index
    %1 = vector.load %arg7[%c0_1, %c0_2] : memref<128x128xf32, #tpu.memory_space<vmem>>, vector<128x128xf32>
    %cst = arith.constant dense<0.000000e+00> : vector<8x128xf32>
    %2 = tpu.matmul %0, %1, %cst {dimension_numbers = #tpu.dot_dimension_numbers<[1], [0], [0], [1], [0, 0, 1, 1], [], []>} : vector<8x128xf32>, vector<128x128xf32>, vector<8x128xf32> -> vector<8x128xf32>
    %3 = arith.subf %0, %2 : vector<8x128xf32>
    %4 = arith.mulf %3, %3 : vector<8x128xf32>
    %cst_3 = arith.constant dense<0.000000e+00> : vector<8x128xf32>
    %5 = tpu.matmul %4, %1, %cst_3 {dimension_numbers = #tpu.dot_dimension_numbers<[1], [0], [0], [1], [0, 0, 1, 1], [], []>} : vector<8x128xf32>, vector<128x128xf32>, vector<8x128xf32> -> vector<8x128xf32>
    %cst_4 = arith.constant 9.99999997E-7 : f32
    %6 = vector.broadcast %cst_4 : f32 to vector<8x128xf32>
    %7 = arith.addf %5, %6 : vector<8x128xf32>
    %8 = math.rsqrt %7 : vector<8x128xf32>
    %9 = arith.mulf %3, %8 : vector<8x128xf32>
    %c0_5 = arith.constant 0 : index
    %c0_6 = arith.constant 0 : index
    %10 = vector.load %arg3[%c0_5, %c0_6] : memref<1x128xf32, #tpu.memory_space<vmem>>, vector<1x128xf32>
    %11 = vector.broadcast %10 : vector<1x128xf32> to vector<8x128xf32>
    %12 = arith.mulf %9, %11 : vector<8x128xf32>
    %c0_7 = arith.constant 0 : index
    %c0_8 = arith.constant 0 : index
    %13 = vector.load %arg4[%c0_7, %c0_8] : memref<1x128xf32, #tpu.memory_space<vmem>>, vector<1x128xf32>
    %14 = vector.broadcast %13 : vector<1x128xf32> to vector<8x128xf32>
    %15 = arith.addf %12, %14 : vector<8x128xf32>
    %c0_9 = arith.constant 0 : index
    %c0_10 = arith.constant 0 : index
    %16 = vector.load %arg5[%c0_9, %c0_10] : memref<128x128xf32, #tpu.memory_space<vmem>>, vector<128x128xf32>
    %cst_11 = arith.constant dense<0.000000e+00> : vector<8x128xf32>
    %17 = tpu.matmul %15, %16, %cst_11 {dimension_numbers = #tpu.dot_dimension_numbers<[1], [0], [0], [1], [0, 0, 1, 1], [], []>} : vector<8x128xf32>, vector<128x128xf32>, vector<8x128xf32> -> vector<8x128xf32>
    %c0_12 = arith.constant 0 : index
    %c0_13 = arith.constant 0 : index
    %18 = vector.load %arg6[%c0_12, %c0_13] : memref<1x128xf32, #tpu.memory_space<vmem>>, vector<1x128xf32>
    %19 = vector.broadcast %18 : vector<1x128xf32> to vector<8x128xf32>
    %20 = arith.addf %17, %19 : vector<8x128xf32>
    %c8_i32 = arith.constant 8 : i32
    %21 = arith.muli %arg0, %c8_i32 : i32
    %c0_14 = arith.constant 0 : index
    %22 = memref.load %arg1[%c0_14] : memref<1xi32, #tpu.memory_space<smem>>
    %23 = tpu.iota {dimensions = array<i32: 0>} : vector<8x128xi32>
    %24 = vector.broadcast %21 : i32 to vector<8x128xi32>
    %25 = arith.addi %23, %24 : vector<8x128xi32>
    %26 = tpu.iota {dimensions = array<i32: 1>} : vector<8x128xi32>
    %c128_i32 = arith.constant 128 : i32
    %27 = vector.broadcast %c128_i32 : i32 to vector<8x128xi32>
    %28 = arith.muli %25, %27 : vector<8x128xi32>
    %29 = arith.addi %28, %26 : vector<8x128xi32>
    %c-1640531535_i32 = arith.constant -1640531535 : i32
    %30 = vector.broadcast %c-1640531535_i32 : i32 to vector<8x128xi32>
    %31 = arith.muli %29, %30 : vector<8x128xi32>
    %32 = vector.broadcast %22 : i32 to vector<8x128xi32>
    %33 = arith.addi %31, %32 : vector<8x128xi32>
    %c16_i32 = arith.constant 16 : i32
    %34 = vector.broadcast %c16_i32 : i32 to vector<8x128xi32>
    %35 = arith.shrui %33, %34 : vector<8x128xi32>
    %36 = arith.xori %33, %35 : vector<8x128xi32>
    %c2146121005_i32 = arith.constant 2146121005 : i32
    %37 = vector.broadcast %c2146121005_i32 : i32 to vector<8x128xi32>
    %38 = arith.muli %36, %37 : vector<8x128xi32>
    %c15_i32 = arith.constant 15 : i32
    %39 = vector.broadcast %c15_i32 : i32 to vector<8x128xi32>
    %40 = arith.shrui %38, %39 : vector<8x128xi32>
    %41 = arith.xori %38, %40 : vector<8x128xi32>
    %c-2073254261_i32 = arith.constant -2073254261 : i32
    %42 = vector.broadcast %c-2073254261_i32 : i32 to vector<8x128xi32>
    %43 = arith.muli %41, %42 : vector<8x128xi32>
    %c16_i32_15 = arith.constant 16 : i32
    %44 = vector.broadcast %c16_i32_15 : i32 to vector<8x128xi32>
    %45 = arith.shrui %43, %44 : vector<8x128xi32>
    %46 = arith.xori %43, %45 : vector<8x128xi32>
    %c8_i32_16 = arith.constant 8 : i32
    %47 = vector.broadcast %c8_i32_16 : i32 to vector<8x128xi32>
    %48 = arith.shrui %46, %47 : vector<8x128xi32>
    %c1677722_i32 = arith.constant 1677722 : i32
    %49 = vector.broadcast %c1677722_i32 : i32 to vector<8x128xi32>
    %50 = arith.cmpi sge, %48, %49 : vector<8x128xi32>
    %cst_17 = arith.constant 1.11111116 : f32
    %51 = vector.broadcast %cst_17 : f32 to vector<8x128xf32>
    %52 = arith.mulf %20, %51 : vector<8x128xf32>
    %cst_18 = arith.constant 0.000000e+00 : f32
    %53 = vector.broadcast %cst_18 : f32 to vector<8x128xf32>
    %54 = arith.select %50, %52, %53 : vector<8x128xi1>, vector<8x128xf32>
    %55 = arith.addf %0, %54 : vector<8x128xf32>
    %c0_19 = arith.constant 0 : index
    %c0_20 = arith.constant 0 : index
    %56 = vector.load %arg8[%c0_19, %c0_20] : memref<8x128xf32, #tpu.memory_space<vmem>>, vector<8x128xf32>
    tpu.vector_store %arg8[%c0_19, %c0_20], %55 {strides = array<i32>} : memref<8x128xf32, #tpu.memory_space<vmem>>, vector<8x128xf32>,
    return
  }
  func.func @transform_0(%arg0: i32, %arg1: memref<1xi32, #tpu.memory_space<smem>>) -> (i32, i32) {
    %c0_i32 = arith.constant 0 : i32
    %c0_i32_0 = arith.constant 0 : i32
    return %arg0, %c0_i32 : i32, i32
  }
  func.func @transform_1(%arg0: i32, %arg1: memref<1xi32, #tpu.memory_space<smem>>) -> (i32, i32) {
    %c0_i32 = arith.constant 0 : i32
    %c0_i32_0 = arith.constant 0 : i32
    %c0_i32_1 = arith.constant 0 : i32
    return %c0_i32, %c0_i32_0 : i32, i32
  }
  func.func @transform_2(%arg0: i32, %arg1: memref<1xi32, #tpu.memory_space<smem>>) -> (i32, i32) {
    %c0_i32 = arith.constant 0 : i32
    %c0_i32_0 = arith.constant 0 : i32
    %c0_i32_1 = arith.constant 0 : i32
    return %c0_i32, %c0_i32_0 : i32, i32
  }
  func.func @transform_3(%arg0: i32, %arg1: memref<1xi32, #tpu.memory_space<smem>>) -> (i32, i32) {
    %c0_i32 = arith.constant 0 : i32
    %c0_i32_0 = arith.constant 0 : i32
    %c0_i32_1 = arith.constant 0 : i32
    return %c0_i32, %c0_i32_0 : i32, i32
  }
  func.func @transform_4(%arg0: i32, %arg1: memref<1xi32, #tpu.memory_space<smem>>) -> (i32, i32) {
    %c0_i32 = arith.constant 0 : i32
    %c0_i32_0 = arith.constant 0 : i32
    %c0_i32_1 = arith.constant 0 : i32
    return %c0_i32, %c0_i32_0 : i32, i32
  }
  func.func @transform_5(%arg0: i32, %arg1: memref<1xi32, #tpu.memory_space<smem>>) -> (i32, i32) {
    %c0_i32 = arith.constant 0 : i32
    %c0_i32_0 = arith.constant 0 : i32
    %c0_i32_1 = arith.constant 0 : i32
    return %c0_i32, %c0_i32_0 : i32, i32
  }
  func.func @transform_6(%arg0: i32, %arg1: memref<1xi32, #tpu.memory_space<smem>>) -> (i32, i32) {
    %c0_i32 = arith.constant 0 : i32
    %c0_i32_0 = arith.constant 0 : i32
    return %arg0, %c0_i32 : i32, i32
  }
}

</mosaic_0001>

<llo_original>
// kernel: tpu_custom_call.1
$region0: #{tpu_custom_call.1}
  #allocation0 [shape = 'u32[]', space=smem, size = 0x4, offset = 0x4, fixed_abs, tag = 'smem constant byte address 0x4 - core index']
  #allocation1 [shape = 'u32[144,128]{1,0:T(1,128)}', space=vmem, size = 0x12000, scoped, tag = 'internal scratch']
  #allocation2 [shape = 's32[1]{0}', space=sflag, size = 0x4, scoped, tag = 'scoped memory for tpu_custom_call.1']
  #allocation3 [shape = 's32[1]{0:T(128)S(6)}', space=smem, size = 0x200, scoped, tag = 'prefetched SMEM operand 0']
  %s0 = inlined_call_operand.<no memory space> [shape: s32[1], index: 0, kind: input, shape index: {}]
  %s1 = inlined_call_operand.hbm [shape: f32[8,128], index: 1, kind: input, shape index: {}]
  %s2 = inlined_call_operand.vmem [shape: f32[1,128], index: 2, kind: input, shape index: {}]
  %s3 = inlined_call_operand.vmem [shape: f32[1,128], index: 3, kind: input, shape index: {}]
  %s4 = inlined_call_operand.hbm [shape: f32[128,128], index: 4, kind: input, shape index: {}]
  %s5 = inlined_call_operand.vmem [shape: f32[1,128], index: 5, kind: input, shape index: {}]
  %s6 = inlined_call_operand.hbm [shape: f32[128,128], index: 6, kind: input, shape index: {}]
  %s7 = inlined_call_operand.hbm [shape: f32[8,128], index: 7, kind: output, shape index: {}]
  %s8 = sld [smem:[#allocation0]]
  $region46: #{tpu_custom_call.1} parent=0
    _
  %s10 = ssub.s32 1, %s8
  %s11 = scalar_select 0, %s10, %s8
  %12 = sst [smem:[#allocation3]] %s0
  $region1: #{tpu_custom_call.1} parent=0
    #allocation4 [shape = 'u8[4096]{0}', space=vmem, size = 0x1000, scoped, tag = 'input window, operand 1, single buffered']
    #allocation5 [shape = 's32[1]{0}', space=sflag, size = 0x4, scoped, tag = 'scoped memory for tpu_custom_call.1']
    #allocation6 [shape = 's32[1]{0}', space=sflag, size = 0x4, scoped, tag = 'scoped memory for tpu_custom_call.1']
    #allocation7 [shape = 'u8[65536]{0}', space=vmem, size = 0x10000, scoped, tag = 'input window, operand 4, single buffered']
    #allocation8 [shape = 's32[1]{0}', space=sflag, size = 0x4, scoped, tag = 'scoped memory for tpu_custom_call.1']
    #allocation9 [shape = 'u8[65536]{0}', space=vmem, size = 0x10000, scoped, tag = 'input window, operand 6, single buffered']
    #allocation10 [shape = 'u8[4096]{0}', space=vmem, size = 0x1000, scoped, tag = 'output window, operand 0, single buffered']
    %13 = vsyncpa [#allocation5], 0
    %14 = vsyncpa [#allocation8], 0
    %15 = vsyncpa [#allocation6], 0
    // Predicated region
    $region2: #{tpu_custom_call.1} parent=1 // pred_check
      _
    $region3: #{tpu_custom_call.1} parent=1 // pred_check_branch
      %17 = sbr.rel (0) target = $region5
    $region4: #{tpu_custom_call.1} parent=1 // pred_region
      %s19 = ssub.s32 128, 128
      %20 = vsyncadd [#allocation5], %s19
      %s22 = sshll.u32 [#allocation4], 4
      %s23 = int_to_ptr.vmem [resolvable:$true] %s22
      %25 = dma.hbm_to_vmem [thread:$0]  %s1, 128, %s23, [#allocation5]
    $region5: #{tpu_custom_call.1} parent=1 // pred_fallthru
      _
    // Predicated region
    $region6: #{tpu_custom_call.1} parent=1 // pred_check
      _
    $region7: #{tpu_custom_call.1} parent=1 // pred_check_branch
      %27 = sbr.rel (0) target = $region9
    $region8: #{tpu_custom_call.1} parent=1 // pred_region
      _
    $region9: #{tpu_custom_call.1} parent=1 // pred_fallthru
      _
    // Predicated region
    $region10: #{tpu_custom_call.1} parent=1 // pred_check
      _
    $region11: #{tpu_custom_call.1} parent=1 // pred_check_branch
      %29 = sbr.rel (0) target = $region13
    $region12: #{tpu_custom_call.1} parent=1 // pred_region
      _
    $region13: #{tpu_custom_call.1} parent=1 // pred_fallthru
      _
    // Predicated region
    $region14: #{tpu_custom_call.1} parent=1 // pred_check
      _
    $region15: #{tpu_custom_call.1} parent=1 // pred_check_branch
      %31 = sbr.rel (0) target = $region17
    $region16: #{tpu_custom_call.1} parent=1 // pred_region
      %s33 = ssub.s32 2048, 2048
      %34 = vsyncadd [#allocation8], %s33
      %s35 = sshll.u32 [#allocation7], 4
      %s36 = int_to_ptr.vmem [resolvable:$true] %s35
      %41 = dma.hbm_to_vmem [thread:$0]  %s4, 2048, %s36, [#allocation8], 128, 128, 8
    $region17: #{tpu_custom_call.1} parent=1 // pred_fallthru
      _
    // Predicated region
    $region18: #{tpu_custom_call.1} parent=1 // pred_check
      _
    $region19: #{tpu_custom_call.1} parent=1 // pred_check_branch
      %43 = sbr.rel (0) target = $region21
    $region20: #{tpu_custom_call.1} parent=1 // pred_region
      _
    $region21: #{tpu_custom_call.1} parent=1 // pred_fallthru
      _
    // Predicated region
    $region22: #{tpu_custom_call.1} parent=1 // pred_check
      _
    $region23: #{tpu_custom_call.1} parent=1 // pred_check_branch
      %45 = sbr.rel (0) target = $region25
    $region24: #{tpu_custom_call.1} parent=1 // pred_region
      %s47 = ssub.s32 2048, 2048
      %48 = vsyncadd [#allocation8], %s47
      %s49 = sshll.u32 [#allocation9], 4
      %s50 = int_to_ptr.vmem [resolvable:$true] %s49
      %55 = dma.hbm_to_vmem [thread:$0]  %s6, 2048, %s50, [#allocation8], 128, 128, 8
    $region25: #{tpu_custom_call.1} parent=1 // pred_fallthru
      _
    // Predicated region
    $region26: #{tpu_custom_call.1} parent=1 // pred_check
      _
    $region27: #{tpu_custom_call.1} parent=1 // pred_check_branch
      %57 = sbr.rel (0) target = $region29
    $region28: #{tpu_custom_call.1} parent=1 // pred_region
      %58 = dma.done [#allocation5], 128
    $region29: #{tpu_custom_call.1} parent=1 // pred_fallthru
      _
    // Predicated region
    $region30: #{tpu_custom_call.1} parent=1 // pred_check
      _
    $region31: #{tpu_custom_call.1} parent=1 // pred_check_branch
      %60 = sbr.rel (0) target = $region33
    $region32: #{tpu_custom_call.1} parent=1 // pred_region
      %61 = dma.done [#allocation8], 2048
    $region33: #{tpu_custom_call.1} parent=1 // pred_fallthru
      _
    // Predicated region
    $region34: #{tpu_custom_call.1} parent=1 // pred_check
      _
    $region35: #{tpu_custom_call.1} parent=1 // pred_check_branch
      %63 = sbr.rel (0) target = $region37
    $region36: #{tpu_custom_call.1} parent=1 // pred_region
      %64 = dma.done [#allocation8], 2048
    $region37: #{tpu_custom_call.1} parent=1 // pred_fallthru
      _
    %v65 = vld [vmem:[#allocation4] sm:$0xff]
    %v66 = vld [vmem:[#allocation9] sm:$0xff]
    %v67 = vld [vmem:[#allocation9 + $0x8] sm:$0xff]
    %v68 = vld [vmem:[#allocation9 + $0x10] sm:$0xff]
    %v69 = vld [vmem:[#allocation9 + $0x18] sm:$0xff]
    %v70 = vld [vmem:[#allocation9 + $0x20] sm:$0xff]
    %v71 = vld [vmem:[#allocation9 + $0x28] sm:$0xff]
    %v72 = vld [vmem:[#allocation9 + $0x30] sm:$0xff]
    %v73 = vld [vmem:[#allocation9 + $0x38] sm:$0xff]
    %v74 = vld [vmem:[#allocation9 + $0x40] sm:$0xff]
    %v75 = vld [vmem:[#allocation9 + $0x48] sm:$0xff]
    %v76 = vld [vmem:[#allocation9 + $0x50] sm:$0xff]
    %v77 = vld [vmem:[#allocation9 + $0x58] sm:$0xff]
    %v78 = vld [vmem:[#allocation9 + $0x60] sm:$0xff]
    %v79 = vld [vmem:[#allocation9 + $0x68] sm:$0xff]
    %v80 = vld [vmem:[#allocation9 + $0x70] sm:$0xff]
    %v81 = vld [vmem:[#allocation9 + $0x78] sm:$0xff]
    %82 = vmatprep.subr.mxu0 0.0
    %83 = vmatpush1.msra.mxu0 %v81
    %84 = vmatprep.subr.mxu0 0.0
    %85 = vmatpush1.msra.mxu0 %v80
    %86 = vmatprep.subr.mxu0 0.0
    %87 = vmatpush1.msra.mxu0 %v79
    %88 = vmatprep.subr.mxu0 0.0
    %89 = vmatpush1.msra.mxu0 %v78
    %90 = vmatprep.subr.mxu0 0.0
    %91 = vmatpush1.msra.mxu0 %v77
    %92 = vmatprep.subr.mxu0 0.0
    %93 = vmatpush1.msra.mxu0 %v76
    %94 = vmatprep.subr.mxu0 0.0
    %95 = vmatpush1.msra.mxu0 %v75
    %96 = vmatprep.subr.mxu0 0.0
    %97 = vmatpush1.msra.mxu0 %v74
    %98 = vmatprep.subr.mxu0 0.0
    %99 = vmatpush1.msra.mxu0 %v73
    %100 = vmatprep.subr.mxu0 0.0
    %101 = vmatpush1.msra.mxu0 %v72
    %102 = vmatprep.subr.mxu0 0.0
    %103 = vmatpush1.msra.mxu0 %v71
    %104 = vmatprep.subr.mxu0 0.0
    %105 = vmatpush1.msra.mxu0 %v70
    %106 = vmatprep.subr.mxu0 0.0
    %107 = vmatpush1.msra.mxu0 %v69
    %108 = vmatprep.subr.mxu0 0.0
    %109 = vmatpush1.msra.mxu0 %v68
    %110 = vmatprep.subr.mxu0 0.0
    %111 = vmatpush1.msra.mxu0 %v67
    %112 = vmatprep.subr.mxu0 0.0
    %113 = vmatpush1.msra.mxu0 %v66
    %114 = vmatprep.subr.mxu0 0.0
    %115 = vmatpush2.msra.mxu0 0.0
    %116 = vmatprep.subr.mxu0 0.0
    %117 = vmatpush2.msra.mxu0 0.0
    %118 = vmatprep.subr.mxu0 0.0
    %119 = vmatpush2.msra.mxu0 0.0
    %120 = vmatprep.subr.mxu0 0.0
    %121 = vmatpush2.msra.mxu0 0.0
    %122 = vmatprep.subr.mxu0 0.0
    %123 = vmatpush2.msra.mxu0 0.0
    %124 = vmatprep.subr.mxu0 0.0
    %125 = vmatpush2.msra.mxu0 0.0
    %126 = vmatprep.subr.mxu0 0.0
    %127 = vmatpush2.msra.mxu0 0.0
    %128 = vmatprep.subr.mxu0 0.0
    %129 = vmatpush2.msra.mxu0 0.0
    %130 = vmatprep.subr.mxu0 0.0
    %131 = vmatpush2.msra.mxu0 0.0
    %132 = vmatprep.subr.mxu0 0.0
    %133 = vmatpush2.msra.mxu0 0.0
    %134 = vmatprep.subr.mxu0 0.0
    %135 = vmatpush2.msra.mxu0 0.0
    %136 = vmatprep.subr.mxu0 0.0
    %137 = vmatpush2.msra.mxu0 0.0
    %138 = vmatprep.subr.mxu0 0.0
    %139 = vmatpush2.msra.mxu0 0.0
    %140 = vmatprep.subr.mxu0 0.0
    %141 = vmatpush2.msra.mxu0 0.0
    %142 = vmatprep.subr.mxu0 0.0
    %143 = vmatpush2.msra.mxu0 0.0
    %144 = vmatprep.subr.mxu0 0.0
    %145 = vmatpush2.msra.mxu0 0.0
    %146 = vmatprep.mubr.f32.mxu0 0.0
    %147 = vmatmul.mubr.f32.gmra.mxu0 %v65
    %v148 = vpop.f32.mrf.mxu0
    %v149 = vadd.f32 0.0, %v148
    %v150 = vpop.f32.mrf.mxu0
    %151 = vdwg.mxu0
    %v152 = vsub.f32 %v65, %v149
    %v153 = vmul.f32 %v152, %v152
    %154 = vmatprep.subr.mxu0 0.0
    %155 = vmatpush1.msra.mxu0 %v81
    %156 = vmatprep.subr.mxu0 0.0
    %157 = vmatpush1.msra.mxu0 %v80
    %158 = vmatprep.subr.mxu0 0.0
    %159 = vmatpush1.msra.mxu0 %v79
    %160 = vmatprep.subr.mxu0 0.0
    %161 = vmatpush1.msra.mxu0 %v78
    %162 = vmatprep.subr.mxu0 0.0
    %163 = vmatpush1.msra.mxu0 %v77
    %164 = vmatprep.subr.mxu0 0.0
    %165 = vmatpush1.msra.mxu0 %v76
    %166 = vmatprep.subr.mxu0 0.0
    %167 = vmatpush1.msra.mxu0 %v75
    %168 = vmatprep.subr.mxu0 0.0
    %169 = vmatpush1.msra.mxu0 %v74
    %170 = vmatprep.subr.mxu0 0.0
    %171 = vmatpush1.msra.mxu0 %v73
    %172 = vmatprep.subr.mxu0 0.0
    %173 = vmatpush1.msra.mxu0 %v72
    %174 = vmatprep.subr.mxu0 0.0
    %175 = vmatpush1.msra.mxu0 %v71
    %176 = vmatprep.subr.mxu0 0.0
    %177 = vmatpush1.msra.mxu0 %v70
    %178 = vmatprep.subr.mxu0 0.0
    %179 = vmatpush1.msra.mxu0 %v69
    %180 = vmatprep.subr.mxu0 0.0
    %181 = vmatpush1.msra.mxu0 %v68
    %182 = vmatprep.subr.mxu0 0.0
    %183 = vmatpush1.msra.mxu0 %v67
    %184 = vmatprep.subr.mxu0 0.0
    %185 = vmatpush1.msra.mxu0 %v66
    %186 = vmatprep.subr.mxu0 0.0
    %187 = vmatpush2.msra.mxu0 0.0
    %188 = vmatprep.subr.mxu0 0.0
    %189 = vmatpush2.msra.mxu0 0.0
    %190 = vmatprep.subr.mxu0 0.0
    %191 = vmatpush2.msra.mxu0 0.0
    %192 = vmatprep.subr.mxu0 0.0
    %193 = vmatpush2.msra.mxu0 0.0
    %194 = vmatprep.subr.mxu0 0.0
    %195 = vmatpush2.msra.mxu0 0.0
    %196 = vmatprep.subr.mxu0 0.0
    %197 = vmatpush2.msra.mxu0 0.0
    %198 = vmatprep.subr.mxu0 0.0
    %199 = vmatpush2.msra.mxu0 0.0
    %200 = vmatprep.subr.mxu0 0.0
    %201 = vmatpush2.msra.mxu0 0.0
    %202 = vmatprep.subr.mxu0 0.0
    %203 = vmatpush2.msra.mxu0 0.0
    %204 = vmatprep.subr.mxu0 0.0
    %205 = vmatpush2.msra.mxu0 0.0
    %206 = vmatprep.subr.mxu0 0.0
    %207 = vmatpush2.msra.mxu0 0.0
    %208 = vmatprep.subr.mxu0 0.0
    %209 = vmatpush2.msra.mxu0 0.0
    %210 = vmatprep.subr.mxu0 0.0
    %211 = vmatpush2.msra.mxu0 0.0
    %212 = vmatprep.subr.mxu0 0.0
    %213 = vmatpush2.msra.mxu0 0.0
    %214 = vmatprep.subr.mxu0 0.0
    %215 = vmatpush2.msra.mxu0 0.0
    %216 = vmatprep.subr.mxu0 0.0
    %217 = vmatpush2.msra.mxu0 0.0
    %218 = vmatprep.mubr.f32.mxu0 0.0
    %219 = vmatmul.mubr.f32.gmra.mxu0 %v153
    %v220 = vpop.f32.mrf.mxu0
    %v221 = vadd.f32 1e-06, %v220
    %v222 = vpop.f32.mrf.mxu0
    %223 = vdwg.mxu0
    %v224 = vrsqrt.pop %v221
    %v225 = vmul.f32 %v152, %v224
    %v226 = vld [vmem:[%s2] sm:$0x1]
    %v228 = vlaneseq
    %v229 = vshrl.u32 %v228, 7
    %v230 = vsub.s32 0, %v229
    %v231 = vrot.slane %v226, %v230
    %v233 = vmul.f32 %v225, %v231
    %v234 = vld [vmem:[%s3] sm:$0x1]
    %v236 = vlaneseq
    %v237 = vshrl.u32 %v236, 7
    %v238 = vsub.s32 0, %v237
    %v239 = vrot.slane %v234, %v238
    %v241 = vadd.f32 %v233, %v239
    %v242 = vld [vmem:[#allocation7] sm:$0xff]
    %v243 = vld [vmem:[#allocation7 + $0x8] sm:$0xff]
    %v244 = vld [vmem:[#allocation7 + $0x10] sm:$0xff]
    %v245 = vld [vmem:[#allocation7 + $0x18] sm:$0xff]
    %v246 = vld [vmem:[#allocation7 + $0x20] sm:$0xff]
    %v247 = vld [vmem:[#allocation7 + $0x28] sm:$0xff]
    %v248 = vld [vmem:[#allocation7 + $0x30] sm:$0xff]
    %v249 = vld [vmem:[#allocation7 + $0x38] sm:$0xff]
    %v250 = vld [vmem:[#allocation7 + $0x40] sm:$0xff]
    %v251 = vld [vmem:[#allocation7 + $0x48] sm:$0xff]
    %v252 = vld [vmem:[#allocation7 + $0x50] sm:$0xff]
    %v253 = vld [vmem:[#allocation7 + $0x58] sm:$0xff]
    %v254 = vld [vmem:[#allocation7 + $0x60] sm:$0xff]
    %v255 = vld [vmem:[#allocation7 + $0x68] sm:$0xff]
    %v256 = vld [vmem:[#allocation7 + $0x70] sm:$0xff]
    %v257 = vld [vmem:[#allocation7 + $0x78] sm:$0xff]
    %v258 = vld [vmem:[%s5] sm:$0x1]
    %v260 = vlaneseq
    %v261 = vshrl.u32 %v260, 7
    %v262 = vsub.s32 0, %v261
    %v263 = vrot.slane %v258, %v262
    %265 = vmatprep.subr.mxu0 0.0
    %266 = vmatpush1.msra.mxu0 %v257
    %267 = vmatprep.subr.mxu0 0.0
    %268 = vmatpush1.msra.mxu0 %v256
    %269 = vmatprep.subr.mxu0 0.0
    %270 = vmatpush1.msra.mxu0 %v255
    %271 = vmatprep.subr.mxu0 0.0
    %272 = vmatpush1.msra.mxu0 %v254
    %273 = vmatprep.subr.mxu0 0.0
    %274 = vmatpush1.msra.mxu0 %v253
    %275 = vmatprep.subr.mxu0 0.0
    %276 = vmatpush1.msra.mxu0 %v252
    %277 = vmatprep.subr.mxu0 0.0
    %278 = vmatpush1.msra.mxu0 %v251
    %279 = vmatprep.subr.mxu0 0.0
    %280 = vmatpush1.msra.mxu0 %v250
    %281 = vmatprep.subr.mxu0 0.0
    %282 = vmatpush1.msra.mxu0 %v249
    %283 = vmatprep.subr.mxu0 0.0
    %284 = vmatpush1.msra.mxu0 %v248
    %285 = vmatprep.subr.mxu0 0.0
    %286 = vmatpush1.msra.mxu0 %v247
    %287 = vmatprep.subr.mxu0 0.0
    %288 = vmatpush1.msra.mxu0 %v246
    %289 = vmatprep.subr.mxu0 0.0
    %290 = vmatpush1.msra.mxu0 %v245
    %291 = vmatprep.subr.mxu0 0.0
    %292 = vmatpush1.msra.mxu0 %v244
    %293 = vmatprep.subr.mxu0 0.0
    %294 = vmatpush1.msra.mxu0 %v243
    %295 = vmatprep.subr.mxu0 0.0
    %296 = vmatpush1.msra.mxu0 %v242
    %297 = vmatprep.subr.mxu0 0.0
    %298 = vmatpush2.msra.mxu0 0.0
    %299 = vmatprep.subr.mxu0 0.0
    %300 = vmatpush2.msra.mxu0 0.0
    %301 = vmatprep.subr.mxu0 0.0
    %302 = vmatpush2.msra.mxu0 0.0
    %303 = vmatprep.subr.mxu0 0.0
    %304 = vmatpush2.msra.mxu0 0.0
    %305 = vmatprep.subr.mxu0 0.0
    %306 = vmatpush2.msra.mxu0 0.0
    %307 = vmatprep.subr.mxu0 0.0
    %308 = vmatpush2.msra.mxu0 0.0
    %309 = vmatprep.subr.mxu0 0.0
    %310 = vmatpush2.msra.mxu0 0.0
    %311 = vmatprep.subr.mxu0 0.0
    %312 = vmatpush2.msra.mxu0 0.0
    %313 = vmatprep.subr.mxu0 0.0
    %314 = vmatpush2.msra.mxu0 0.0
    %315 = vmatprep.subr.mxu0 0.0
    %316 = vmatpush2.msra.mxu0 0.0
    %317 = vmatprep.subr.mxu0 0.0
    %318 = vmatpush2.msra.mxu0 0.0
    %319 = vmatprep.subr.mxu0 0.0
    %320 = vmatpush2.msra.mxu0 0.0
    %321 = vmatprep.subr.mxu0 0.0
    %322 = vmatpush2.msra.mxu0 0.0
    %323 = vmatprep.subr.mxu0 0.0
    %324 = vmatpush2.msra.mxu0 0.0
    %325 = vmatprep.subr.mxu0 0.0
    %326 = vmatpush2.msra.mxu0 0.0
    %327 = vmatprep.subr.mxu0 0.0
    %328 = vmatpush2.msra.mxu0 0.0
    %329 = vmatprep.mubr.f32.mxu0 0.0
    %330 = vmatmul.mubr.f32.gmra.mxu0 %v241
    %v331 = vpop.f32.mrf.mxu0
    %v332 = vadd.f32 %v263, %v331
    %v333 = vpop.f32.mrf.mxu0
    %334 = vdwg.mxu0
    %s335 = smul.u32 0, 8
    %s336 = sld [smem:[#allocation3]]
    %v337 = vlaneseq
    %v338 = vshrl.u32 %v337, 7
    %v339 = vstv %s335
    %v340 = vadd.s32 %v338, %v339
    %v341 = vlaneseq
    %v342 = vand.u32 %v341, 127
    %v343 = vmul.u32 %v340, 128
    %v344 = vadd.s32 %v343, %v342
    %v345 = vmul.u32 %v344, 2654435761
    %v346 = vstv %s336
    %v347 = vadd.s32 %v345, %v346
    %v348 = vshrl.u32 %v347, 16
    %v349 = vxor.u32 %v347, %v348
    %v350 = vmul.u32 %v349, 2146121005
    %v351 = vshrl.u32 %v350, 15
    %v352 = vxor.u32 %v350, %v351
    %v353 = vmul.u32 %v352, 2221713035
    %v354 = vshrl.u32 %v353, 16
    %v355 = vxor.u32 %v353, %v354
    %v356 = vshrl.u32 %v355, 8
    %vm357 = vcmp.ge.s32.totalorder %v356, 1677722
    %v358 = vmul.f32 %v332, 1.1111112
    %v359 = vsel %vm357, %v358, 0.0
    %v360 = vadd.f32 %v65, %v359
    %361 = vst [vmem:[#allocation10] sm:$0xff] %v360
    // Predicated region
    $region38: #{tpu_custom_call.1} parent=1 // pred_check
      _
    $region39: #{tpu_custom_call.1} parent=1 // pred_check_branch
      %363 = sbr.rel (0) target = $region41
    $region40: #{tpu_custom_call.1} parent=1 // pred_region
      %s365 = ssub.s32 128, 128
      %366 = vsyncadd [#allocation6], %s365
      %s368 = sshll.u32 [#allocation10], 4
      %s369 = int_to_ptr.vmem [resolvable:$true] %s368
      %371 = dma.vmem_to_hbm [thread:$0]  %s369, 128, %s7, [#allocation6]
    $region41: #{tpu_custom_call.1} parent=1 // pred_fallthru
      _
    // Predicated region
    $region42: #{tpu_custom_call.1} parent=1 // pred_check
      _
    $region43: #{tpu_custom_call.1} parent=1 // pred_check_branch
      %373 = sbr.rel (0) target = $region45
    $region44: #{tpu_custom_call.1} parent=1 // pred_region
      %374 = dma.done [#allocation6], 128
    $region45: #{tpu_custom_call.1} parent=1 // pred_fallthru
      _
    %375 = vsyncpa [#allocation5], 1
    %376 = vsyncpa [#allocation8], 1
    %377 = vsyncpa [#allocation6], 1

</llo_original>
